<compile_context>
chip_gen: v6e
topology: v6e:2x2x1
jax: 0.10.0
libtpu: 0.0.40
codegen_flags: <defaults>
</compile_context>

<pallas_src>
import functools

import jax
import jax.numpy as jnp
from jax.experimental import pallas as pl
from jax.experimental.pallas import tpu as pltpu

LANE = 128  # TPU lane width; batch tiles are multiples of this


def _round_up(x, m):
    return ((x + m - 1) // m) * m


# --------------------------------------------------------------------------
# Fused kernel (transposed layout: feature rows x batch lanes)
#   backbone (proj + tanh + add)  ->  head (Linear -> ReLU -> Linear(H,1))
# Sigmoid and the final scalar bias are applied in the wrapper on [B, 1].
# --------------------------------------------------------------------------
def _fused_forward_kernel(
    xT_ref,    # [Dx, bt]  streamed activation (mxu_dtype)
    sT_ref,    # [Ds, bt]  streamed pooled-smiles activation (mxu_dtype)
    wxT_ref,   # [E, Dx]   resident (mxu_dtype)
    bx_ref,    # [E, 1]    resident f32
    wsT_ref,   # [E, Ds]   resident (mxu_dtype)
    bs_ref,    # [E, 1]    resident f32
    w1T_ref,   # [H, E]    resident (mxu_dtype)
    b1_ref,    # [H, 1]    resident f32
    w2_ref,    # [H, 1]    resident f32
    o_ref,     # [1, bt]   f32 logits (lane-dense)
):
    # ---- synthetic backbone (stands in for the external `self.model`) ----
    xe = jnp.dot(wxT_ref[...], xT_ref[...],
                 preferred_element_type=jnp.float32) + bx_ref[...]     # [E, bt]
    se = jnp.dot(wsT_ref[...], sT_ref[...],
                 preferred_element_type=jnp.float32) + bs_ref[...]     # [E, bt]
    embT = jnp.tanh(xe) + jnp.tanh(se)                                 # [E, bt] f32

    # ---- classification head: Linear(E,H) -> ReLU -> Linear(H,1) ----
    hT = jnp.dot(w1T_ref[...], embT.astype(w1T_ref.dtype),
                 preferred_element_type=jnp.float32) + b1_ref[...]     # [H, bt]
    hT = jnp.maximum(hT, 0.0)                                          # ReLU (VPU)
    # H -> 1 projection as lane-broadcast multiply + sublane reduce:
    # keeps the output lane-dense with zero padded columns.
    o_ref[...] = jnp.sum(hT * w2_ref[...], axis=0, keepdims=True)      # [1, bt]


def unified_transformer_classification(
    xrd, smiles, params, *, b_tile=512, mxu_dtype=jnp.bfloat16
):
    """xrd: [B, Dx] f32, smiles: [B, S, Ds] f32 -> [B, 1] f32 probabilities.

    Default mxu_dtype=bfloat16 (MXU-native on v5e/v6e/v7x) with f32
    accumulation; pass jnp.float32 for a bit-exact-ish check path.
    """
    B, Dx = xrd.shape
    _, S, Ds = smiles.shape
    E = params["Wx"].shape[1]
    H = params["W1"].shape[1]

    # ---- wrapper-side prep (XLA): pool smiles, pad batch, transpose ----
    smi_pooled = jnp.mean(smiles, axis=1)                              # [B, Ds]

    b_pad = _round_up(B, LANE)
    if b_pad != B:
        xrd = jnp.pad(xrd, ((0, b_pad - B), (0, 0)))
        smi_pooled = jnp.pad(smi_pooled, ((0, b_pad - B), (0, 0)))

    xT = xrd.T.astype(mxu_dtype)          # [Dx, b_pad]  (batch on lanes)
    sT = smi_pooled.T.astype(mxu_dtype)   # [Ds, b_pad]

    # Weights transposed / cast ONCE here (bf16 matmul operands; f32 tails).
    wxT = params["Wx"].T.astype(mxu_dtype)          # [E, Dx]
    wsT = params["Ws"].T.astype(mxu_dtype)          # [E, Ds]
    w1T = params["W1"].T.astype(mxu_dtype)          # [H, E]
    bx = params["bx"].reshape(E, 1).astype(jnp.float32)
    bs = params["bs"].reshape(E, 1).astype(jnp.float32)
    b1 = params["b1"].reshape(H, 1).astype(jnp.float32)
    w2 = params["W2"].reshape(H, 1).astype(jnp.float32)

    # Batch tile (multiple of 128 lanes); >=2 grid steps when batch allows it
    # so v7x's two TensorCores both get work.
    bt = int(min(b_tile, b_pad))
    if b_pad >= 2 * LANE and bt > b_pad // 2:
        bt = b_pad // 2
    bt = max(LANE, (bt // LANE) * LANE)
    while b_pad % bt:
        bt -= LANE
    grid = (b_pad // bt,)

    # Explicit VMEM budget from the real footprint (double-buffered streams,
    # resident weights, in-kernel f32 temporaries).
    act_item = jnp.dtype(mxu_dtype).itemsize
    stream_bytes = 2 * bt * (Dx + Ds) * act_item
    out_bytes = 2 * bt * 4
    weight_bytes = 2 * ((E * Dx + E * Ds + H * E) * act_item + (2 * E + 2 * H) * 4)
    scratch_bytes = (3 * E + 2 * H) * bt * 4
    vmem_limit = int(
        min(48 * 1024 * 1024,
            max(16 * 1024 * 1024,
                2 * (stream_bytes + out_bytes + weight_bytes + scratch_bytes)))
    )

    flops = 2 * B * (Dx * E + Ds * E + E * H + H)
    cost = pl.CostEstimate(
        flops=flops,
        transcendentals=2 * B * E,   # two tanh per row (sigmoid is in XLA)
        bytes_accessed=int(
            (xT.size + sT.size) * act_item
            + b_pad * 4
            + (E * Dx + E * Ds + H * E) * act_item
            + (2 * E + 2 * H) * 4
        ),
    )

    resident = lambda i: (0, 0)  # weights/biases stay in VMEM across the grid

    out = pl.pallas_call(
        _fused_forward_kernel,
        out_shape=jax.ShapeDtypeStruct((1, b_pad), jnp.float32),
        grid=grid,
        in_specs=[
            pl.BlockSpec((Dx, bt), lambda i: (0, i)),   # xrd^T          (streamed)
            pl.BlockSpec((Ds, bt), lambda i: (0, i)),   # pooled smiles^T (streamed)
            pl.BlockSpec((E, Dx), resident),            # Wx^T
            pl.BlockSpec((E, 1), resident),             # bx
            pl.BlockSpec((E, Ds), resident),            # Ws^T
            pl.BlockSpec((E, 1), resident),             # bs
            pl.BlockSpec((H, E), resident),             # W1^T
            pl.BlockSpec((H, 1), resident),             # b1
            pl.BlockSpec((H, 1), resident),             # W2 column
        ],
        out_specs=pl.BlockSpec((1, bt), lambda i: (0, i)),
        compiler_params=pltpu.CompilerParams(
            dimension_semantics=("parallel",),          # megacore-shard the batch
            vmem_limit_bytes=vmem_limit,
        ),
        cost_estimate=cost,
    )(xT, sT, wxT, bx, wsT, bs, w1T, b1, w2)

    # Final scalar bias + sigmoid on the real [B] lanes only (free in XLA).
    logits = out[0, :B] + params["b2"].reshape(())
    return jax.nn.sigmoid(logits).reshape(B, 1).astype(jnp.float32)


# --------------------------------------------------------------------------
# Pure-JAX reference (same math, un-fused) for the self-check.
# TODO(synk): the wrapped `model` is an arbitrary external nn.Module in the
# reference code; it is replaced here by a deterministic synthetic projector.
# --------------------------------------------------------------------------
def reference_forward(xrd, smiles, params):
    x = jnp.tanh(xrd @ params["Wx"] + params["bx"])
    s = jnp.tanh(jnp.mean(smiles, axis=1) @ params["Ws"] + params["bs"])
    emb = x + s
    h = jnp.maximum(emb @ params["W1"] + params["b1"], 0.0)
    y = h @ params["W2"] + params["b2"]
    return 1.0 / (1.0 + jnp.exp(-y))


def make_params(key, xrd_dim, smi_dim, embed_size, mlp_hidden_dim):
    ks = jax.random.split(key, 6)
    scale = 0.05
    return {
        # synthetic backbone
        "Wx": scale * jax.random.normal(ks[0], (xrd_dim, embed_size), jnp.float32),
        "bx": jnp.zeros((1, embed_size), jnp.float32),
        "Ws": scale * jax.random.normal(ks[1], (smi_dim, embed_size), jnp.float32),
        "bs": jnp.zeros((1, embed_size), jnp.float32),
        # classification head: Linear(E, H) -> ReLU -> Linear(H, 1) -> Sigmoid
        "W1": scale * jax.random.normal(ks[2], (embed_size, mlp_hidden_dim), jnp.float32),
        "b1": scale * jax.random.normal(ks[3], (1, mlp_hidden_dim), jnp.float32),
        "W2": scale * jax.random.normal(ks[4], (mlp_hidden_dim, 1), jnp.float32),
        "b2": scale * jax.random.normal(ks[5], (1, 1), jnp.float32),
    }


if __name__ == "__main__":
    # Small shapes consistent with the module's forward.
    B = 2            # batch
    XRD_DIM = 16     # xrd feature dim
    SEQ = 8          # smiles sequence length
    SMI_DIM = 16     # smiles token feature dim
    EMBED = 32       # embed_size     (512 in the original defaults)
    HIDDEN = 64      # mlp_hidden_dim (256 in the original defaults)

    key = jax.random.PRNGKey(0)
    k_x, k_s, k_p = jax.random.split(key, 3)

    xrd = jax.random.normal(k_x, (B, XRD_DIM), jnp.float32)
    smiles = jax.random.normal(k_s, (B, SEQ, SMI_DIM), jnp.float32)
    params = make_params(k_p, XRD_DIM, SMI_DIM, EMBED, HIDDEN)

    ref = reference_forward(xrd, smiles, params)

    # f32 MXU path (tight tolerance).
    out_f32 = jax.block_until_ready(
        unified_transformer_classification(xrd, smiles, params, mxu_dtype=jnp.float32)
    )
    assert out_f32.shape == (B, 1), out_f32.shape
    assert jnp.allclose(out_f32, ref, atol=1e-3, rtol=1e-3), (out_f32, ref)

    # Production default: bf16 MXU operands, f32 accumulation.
    out = jax.block_until_ready(unified_transformer_classification(xrd, smiles, params))
    assert out.shape == (B, 1), out.shape
    assert jnp.allclose(out, ref, atol=1e-2, rtol=1e-2), (out, ref)
    # sigmoid output range sanity
    assert bool(jnp.all((out >= 0.0) & (out <= 1.0)))

    print("KERNEL_OK")
</pallas_src>

<mosaic_0001>
module attributes {stable_mosaic.version = 11 : i64} {
  func.func @_fused_forward_kernel(%arg0: i32, %arg1: memref<16x128xf32, #tpu.memory_space<vmem>>, %arg2: memref<16x128xf32, #tpu.memory_space<vmem>>, %arg3: memref<32x16xf32, #tpu.memory_space<vmem>>, %arg4: memref<32x1xf32, #tpu.memory_space<vmem>>, %arg5: memref<32x16xf32, #tpu.memory_space<vmem>>, %arg6: memref<32x1xf32, #tpu.memory_space<vmem>>, %arg7: memref<64x32xf32, #tpu.memory_space<vmem>>, %arg8: memref<64x1xf32, #tpu.memory_space<vmem>>, %arg9: memref<64x1xf32, #tpu.memory_space<vmem>>, %arg10: memref<1x128xf32, #tpu.memory_space<vmem>>) attributes {dimension_semantics = [#tpu.dimension_semantics<parallel>], iteration_bounds = array<i64: 1>, scalar_prefetch = 0 : i64, scratch_operands = 0 : i64, tpu.core_type = #tpu.core_type<tc>, window_params = [{transform_indices = @transform_0, window_bounds = array<i64: 16, 128>}, {transform_indices = @transform_1, window_bounds = array<i64: 16, 128>}, {pipeline_mode = #tpu.pipeline_mode<synchronous>, transform_indices = @transform_2, window_bounds = array<i64: 32, 16>}, {pipeline_mode = #tpu.pipeline_mode<synchronous>, transform_indices = @transform_3, window_bounds = array<i64: 32, 1>}, {pipeline_mode = #tpu.pipeline_mode<synchronous>, transform_indices = @transform_4, window_bounds = array<i64: 32, 16>}, {pipeline_mode = #tpu.pipeline_mode<synchronous>, transform_indices = @transform_5, window_bounds = array<i64: 32, 1>}, {pipeline_mode = #tpu.pipeline_mode<synchronous>, transform_indices = @transform_6, window_bounds = array<i64: 64, 32>}, {pipeline_mode = #tpu.pipeline_mode<synchronous>, transform_indices = @transform_7, window_bounds = array<i64: 64, 1>}, {pipeline_mode = #tpu.pipeline_mode<synchronous>, transform_indices = @transform_8, window_bounds = array<i64: 64, 1>}, {transform_indices = @transform_9, window_bounds = array<i64: 1, 128>}]} {
    %c0 = arith.constant 0 : index
    %c0_0 = arith.constant 0 : index
    %0 = vector.load %arg3[%c0, %c0_0] : memref<32x16xf32, #tpu.memory_space<vmem>>, vector<32x16xf32>
    %c0_1 = arith.constant 0 : index
    %c0_2 = arith.constant 0 : index
    %1 = vector.load %arg1[%c0_1, %c0_2] : memref<16x128xf32, #tpu.memory_space<vmem>>, vector<16x128xf32>
    %cst = arith.constant dense<0.000000e+00> : vector<32x128xf32>
    %2 = tpu.matmul %0, %1, %cst {dimension_numbers = #tpu.dot_dimension_numbers<[1], [0], [0], [1], [0, 0, 1, 1], [], []>} : vector<32x16xf32>, vector<16x128xf32>, vector<32x128xf32> -> vector<32x128xf32>
    %c0_3 = arith.constant 0 : index
    %c0_4 = arith.constant 0 : index
    %3 = vector.load %arg4[%c0_3, %c0_4] : memref<32x1xf32, #tpu.memory_space<vmem>>, vector<32x1xf32>
    %4 = vector.broadcast %3 : vector<32x1xf32> to vector<32x128xf32>
    %5 = arith.addf %2, %4 : vector<32x128xf32>
    %c0_5 = arith.constant 0 : index
    %c0_6 = arith.constant 0 : index
    %6 = vector.load %arg5[%c0_5, %c0_6] : memref<32x16xf32, #tpu.memory_space<vmem>>, vector<32x16xf32>
    %c0_7 = arith.constant 0 : index
    %c0_8 = arith.constant 0 : index
    %7 = vector.load %arg2[%c0_7, %c0_8] : memref<16x128xf32, #tpu.memory_space<vmem>>, vector<16x128xf32>
    %cst_9 = arith.constant dense<0.000000e+00> : vector<32x128xf32>
    %8 = tpu.matmul %6, %7, %cst_9 {dimension_numbers = #tpu.dot_dimension_numbers<[1], [0], [0], [1], [0, 0, 1, 1], [], []>} : vector<32x16xf32>, vector<16x128xf32>, vector<32x128xf32> -> vector<32x128xf32>
    %c0_10 = arith.constant 0 : index
    %c0_11 = arith.constant 0 : index
    %9 = vector.load %arg6[%c0_10, %c0_11] : memref<32x1xf32, #tpu.memory_space<vmem>>, vector<32x1xf32>
    %10 = vector.broadcast %9 : vector<32x1xf32> to vector<32x128xf32>
    %11 = arith.addf %8, %10 : vector<32x128xf32>
    %12 = math.tanh %5 : vector<32x128xf32>
    %13 = math.tanh %11 : vector<32x128xf32>
    %14 = arith.addf %12, %13 : vector<32x128xf32>
    %c0_12 = arith.constant 0 : index
    %c0_13 = arith.constant 0 : index
    %15 = vector.load %arg7[%c0_12, %c0_13] : memref<64x32xf32, #tpu.memory_space<vmem>>, vector<64x32xf32>
    %cst_14 = arith.constant dense<0.000000e+00> : vector<64x128xf32>
    %16 = tpu.matmul %15, %14, %cst_14 {dimension_numbers = #tpu.dot_dimension_numbers<[1], [0], [0], [1], [0, 0, 1, 1], [], []>} : vector<64x32xf32>, vector<32x128xf32>, vector<64x128xf32> -> vector<64x128xf32>
    %c0_15 = arith.constant 0 : index
    %c0_16 = arith.constant 0 : index
    %17 = vector.load %arg8[%c0_15, %c0_16] : memref<64x1xf32, #tpu.memory_space<vmem>>, vector<64x1xf32>
    %18 = vector.broadcast %17 : vector<64x1xf32> to vector<64x128xf32>
    %19 = arith.addf %16, %18 : vector<64x128xf32>
    %cst_17 = arith.constant 0.000000e+00 : f32
    %20 = vector.broadcast %cst_17 : f32 to vector<64x128xf32>
    %21 = arith.maximumf %19, %20 : vector<64x128xf32>
    %c0_18 = arith.constant 0 : index
    %c0_19 = arith.constant 0 : index
    %22 = vector.load %arg9[%c0_18, %c0_19] : memref<64x1xf32, #tpu.memory_space<vmem>>, vector<64x1xf32>
    %23 = vector.broadcast %22 : vector<64x1xf32> to vector<64x128xf32>
    %24 = arith.mulf %21, %23 : vector<64x128xf32>
    %cst_20 = arith.constant dense<0.000000e+00> : vector<128xf32>
    %25 = vector.multi_reduction <add>, %24, %cst_20 [0] : vector<64x128xf32> to vector<128xf32>
    %26 = vector.shape_cast %25 : vector<128xf32> to vector<1x128xf32>
    %c0_21 = arith.constant 0 : index
    %c0_22 = arith.constant 0 : index
    %27 = vector.load %arg10[%c0_21, %c0_22] : memref<1x128xf32, #tpu.memory_space<vmem>>, vector<1x128xf32>
    tpu.vector_store %arg10[%c0_21, %c0_22], %26 {strides = array<i32>} : memref<1x128xf32, #tpu.memory_space<vmem>>, vector<1x128xf32>,
    return
  }
  func.func @transform_0(%arg0: i32) -> (i32, i32) {
    %c0_i32 = arith.constant 0 : i32
    %c0_i32_0 = arith.constant 0 : i32
    return %c0_i32, %arg0 : i32, i32
  }
  func.func @transform_1(%arg0: i32) -> (i32, i32) {
    %c0_i32 = arith.constant 0 : i32
    %c0_i32_0 = arith.constant 0 : i32
    return %c0_i32, %arg0 : i32, i32
  }
  func.func @transform_2(%arg0: i32) -> (i32, i32) {
    %c0_i32 = arith.constant 0 : i32
    %c0_i32_0 = arith.constant 0 : i32
    %c0_i32_1 = arith.constant 0 : i32
    return %c0_i32, %c0_i32_0 : i32, i32
  }
  func.func @transform_3(%arg0: i32) -> (i32, i32) {
    %c0_i32 = arith.constant 0 : i32
    %c0_i32_0 = arith.constant 0 : i32
    %c0_i32_1 = arith.constant 0 : i32
    return %c0_i32, %c0_i32_0 : i32, i32
  }
  func.func @transform_4(%arg0: i32) -> (i32, i32) {
    %c0_i32 = arith.constant 0 : i32
    %c0_i32_0 = arith.constant 0 : i32
    %c0_i32_1 = arith.constant 0 : i32
    return %c0_i32, %c0_i32_0 : i32, i32
  }
  func.func @transform_5(%arg0: i32) -> (i32, i32) {
    %c0_i32 = arith.constant 0 : i32
    %c0_i32_0 = arith.constant 0 : i32
    %c0_i32_1 = arith.constant 0 : i32
    return %c0_i32, %c0_i32_0 : i32, i32
  }
  func.func @transform_6(%arg0: i32) -> (i32, i32) {
    %c0_i32 = arith.constant 0 : i32
    %c0_i32_0 = arith.constant 0 : i32
    %c0_i32_1 = arith.constant 0 : i32
    return %c0_i32, %c0_i32_0 : i32, i32
  }
  func.func @transform_7(%arg0: i32) -> (i32, i32) {
    %c0_i32 = arith.constant 0 : i32
    %c0_i32_0 = arith.constant 0 : i32
    %c0_i32_1 = arith.constant 0 : i32
    return %c0_i32, %c0_i32_0 : i32, i32
  }
  func.func @transform_8(%arg0: i32) -> (i32, i32) {
    %c0_i32 = arith.constant 0 : i32
    %c0_i32_0 = arith.constant 0 : i32
    %c0_i32_1 = arith.constant 0 : i32
    return %c0_i32, %c0_i32_0 : i32, i32
  }
  func.func @transform_9(%arg0: i32) -> (i32, i32) {
    %c0_i32 = arith.constant 0 : i32
    %c0_i32_0 = arith.constant 0 : i32
    return %c0_i32, %arg0 : i32, i32
  }
}

</mosaic_0001>

<llo_original>
// kernel: tpu_custom_call.1
$region0: #{tpu_custom_call.1}
  #allocation0 [shape = 'u32[]', space=smem, size = 0x4, offset = 0x4, fixed_abs, tag = 'smem constant byte address 0x4 - core index']
  #allocation1 [shape = 'u32[144,128]{1,0:T(1,128)}', space=vmem, size = 0x12000, scoped, tag = 'internal scratch']
  %s0 = inlined_call_operand.vmem [shape: f32[16,128], index: 0, kind: input, shape index: {}]
  %s1 = inlined_call_operand.vmem [shape: f32[16,128], index: 1, kind: input, shape index: {}]
  %s2 = inlined_call_operand.vmem [shape: f32[32,16], index: 2, kind: input, shape index: {}]
  %s3 = inlined_call_operand.vmem [shape: f32[32,1], index: 3, kind: input, shape index: {}]
  %s4 = inlined_call_operand.vmem [shape: f32[32,16], index: 4, kind: input, shape index: {}]
  %s5 = inlined_call_operand.vmem [shape: f32[32,1], index: 5, kind: input, shape index: {}]
  %s6 = inlined_call_operand.vmem [shape: f32[64,32], index: 6, kind: input, shape index: {}]
  %s7 = inlined_call_operand.vmem [shape: f32[64,1], index: 7, kind: input, shape index: {}]
  %s8 = inlined_call_operand.vmem [shape: f32[64,1], index: 8, kind: input, shape index: {}]
  %s9 = inlined_call_operand.hbm [shape: f32[1,128], index: 9, kind: output, shape index: {}]
  %s10 = sld [smem:[#allocation0]]
  $region46: #{tpu_custom_call.1} parent=0
    _
  %s12 = ssub.s32 1, %s10
  %s13 = scalar_select 0, %s12, %s10
  $region1: #{tpu_custom_call.1} parent=0
    #allocation2 [shape = 'u8[512]{0}', space=vmem, size = 0x400, scoped, tag = 'output window, operand 0, single buffered']
    #allocation3 [shape = 's32[1]{0}', space=sflag, size = 0x4, scoped, tag = 'scoped memory for tpu_custom_call.1']
    %14 = vsyncpa [#allocation3], 0
    // Predicated region
    $region2: #{tpu_custom_call.1} parent=1 // pred_check
      _
    $region3: #{tpu_custom_call.1} parent=1 // pred_check_branch
      %16 = sbr.rel (0) target = $region5
    $region4: #{tpu_custom_call.1} parent=1 // pred_region
      _
    $region5: #{tpu_custom_call.1} parent=1 // pred_fallthru
      _
    // Predicated region
    $region6: #{tpu_custom_call.1} parent=1 // pred_check
      _
    $region7: #{tpu_custom_call.1} parent=1 // pred_check_branch
      %18 = sbr.rel (0) target = $region9
    $region8: #{tpu_custom_call.1} parent=1 // pred_region
      _
    $region9: #{tpu_custom_call.1} parent=1 // pred_fallthru
      _
    // Predicated region
    $region10: #{tpu_custom_call.1} parent=1 // pred_check
      _
    $region11: #{tpu_custom_call.1} parent=1 // pred_check_branch
      %20 = sbr.rel (0) target = $region13
    $region12: #{tpu_custom_call.1} parent=1 // pred_region
      _
    $region13: #{tpu_custom_call.1} parent=1 // pred_fallthru
      _
    // Predicated region
    $region14: #{tpu_custom_call.1} parent=1 // pred_check
      _
    $region15: #{tpu_custom_call.1} parent=1 // pred_check_branch
      %22 = sbr.rel (0) target = $region17
    $region16: #{tpu_custom_call.1} parent=1 // pred_region
      _
    $region17: #{tpu_custom_call.1} parent=1 // pred_fallthru
      _
    // Predicated region
    $region18: #{tpu_custom_call.1} parent=1 // pred_check
      _
    $region19: #{tpu_custom_call.1} parent=1 // pred_check_branch
      %24 = sbr.rel (0) target = $region21
    $region20: #{tpu_custom_call.1} parent=1 // pred_region
      _
    $region21: #{tpu_custom_call.1} parent=1 // pred_fallthru
      _
    // Predicated region
    $region22: #{tpu_custom_call.1} parent=1 // pred_check
      _
    $region23: #{tpu_custom_call.1} parent=1 // pred_check_branch
      %26 = sbr.rel (0) target = $region25
    $region24: #{tpu_custom_call.1} parent=1 // pred_region
      _
    $region25: #{tpu_custom_call.1} parent=1 // pred_fallthru
      _
    // Predicated region
    $region26: #{tpu_custom_call.1} parent=1 // pred_check
      _
    $region27: #{tpu_custom_call.1} parent=1 // pred_check_branch
      %28 = sbr.rel (0) target = $region29
    $region28: #{tpu_custom_call.1} parent=1 // pred_region
      _
    $region29: #{tpu_custom_call.1} parent=1 // pred_fallthru
      _
    // Predicated region
    $region30: #{tpu_custom_call.1} parent=1 // pred_check
      _
    $region31: #{tpu_custom_call.1} parent=1 // pred_check_branch
      %30 = sbr.rel (0) target = $region33
    $region32: #{tpu_custom_call.1} parent=1 // pred_region
      _
    $region33: #{tpu_custom_call.1} parent=1 // pred_fallthru
      _
    // Predicated region
    $region34: #{tpu_custom_call.1} parent=1 // pred_check
      _
    $region35: #{tpu_custom_call.1} parent=1 // pred_check_branch
      %32 = sbr.rel (0) target = $region37
    $region36: #{tpu_custom_call.1} parent=1 // pred_region
      _
    $region37: #{tpu_custom_call.1} parent=1 // pred_fallthru
      _
    %v33 = vld [vmem:[%s2] sm:$0xff]
    %v34 = vld [vmem:[%s2 + $0x8] sm:$0xff]
    %v35 = vld [vmem:[%s2 + $0x10] sm:$0xff]
    %v36 = vld [vmem:[%s2 + $0x18] sm:$0xff]
    %v37 = vld [vmem:[%s0] sm:$0xff]
    %v38 = vld [vmem:[%s0 + $0x8] sm:$0xff]
    %v39 = vld [vmem:[%s3] sm:$0xff]
    %v40 = vld [vmem:[%s3 + $0x8] sm:$0xff]
    %v41 = vld [vmem:[%s3 + $0x10] sm:$0xff]
    %v42 = vld [vmem:[%s3 + $0x18] sm:$0xff]
    %44 = vset.pattern.permute.xlu0 0
    %45 = vperm.xlu0 %44, %v39
    %v46 = vpop.permute.xlu0 %45
    %49 = vset.pattern.permute.xlu0 0
    %50 = vperm.xlu0 %49, %v40
    %v51 = vpop.permute.xlu0 %50
    %54 = vset.pattern.permute.xlu0 0
    %55 = vperm.xlu0 %54, %v41
    %v56 = vpop.permute.xlu0 %55
    %59 = vset.pattern.permute.xlu0 0
    %60 = vperm.xlu0 %59, %v42
    %v61 = vpop.permute.xlu0 %60
    %vm63 = vcmask 130048
    %v65 = vsel %vm63, %v33, 0
    %v68 = vsel %vm63, %v34, 0
    %v71 = vsel %vm63, %v35, 0
    %v74 = vsel %vm63, %v36, 0
    %76 = vmatprep.subr.mxu0 0.0
    %77 = vmatpush1.msra.mxu0 0.0
    %78 = vmatprep.subr.mxu0 0.0
    %79 = vmatpush1.msra.mxu0 0.0
    %80 = vmatprep.subr.mxu0 0.0
    %81 = vmatpush1.msra.mxu0 0.0
    %82 = vmatprep.subr.mxu0 0.0
    %83 = vmatpush1.msra.mxu0 0.0
    %84 = vmatprep.subr.mxu0 0.0
    %85 = vmatpush1.msra.mxu0 0.0
    %86 = vmatprep.subr.mxu0 0.0
    %87 = vmatpush1.msra.mxu0 0.0
    %88 = vmatprep.subr.mxu0 0.0
    %89 = vmatpush1.msra.mxu0 0.0
    %90 = vmatprep.subr.mxu0 0.0
    %91 = vmatpush1.msra.mxu0 0.0
    %92 = vmatprep.subr.mxu0 0.0
    %93 = vmatpush1.msra.mxu0 0.0
    %94 = vmatprep.subr.mxu0 0.0
    %95 = vmatpush1.msra.mxu0 0.0
    %96 = vmatprep.subr.mxu0 0.0
    %97 = vmatpush1.msra.mxu0 0.0
    %98 = vmatprep.subr.mxu0 0.0
    %99 = vmatpush1.msra.mxu0 0.0
    %100 = vmatprep.subr.mxu0 0.0
    %101 = vmatpush1.msra.mxu0 0.0
    %102 = vmatprep.subr.mxu0 0.0
    %103 = vmatpush1.msra.mxu0 0.0
    %104 = vmatprep.subr.mxu0 0.0
    %105 = vmatpush1.msra.mxu0 %v38
    %106 = vmatprep.subr.mxu0 0.0
    %107 = vmatpush1.msra.mxu0 %v37
    %108 = vmatprep.subr.mxu0 0.0
    %109 = vmatpush2.msra.mxu0 0.0
    %110 = vmatprep.subr.mxu0 0.0
    %111 = vmatpush2.msra.mxu0 0.0
    %112 = vmatprep.subr.mxu0 0.0
    %113 = vmatpush2.msra.mxu0 0.0
    %114 = vmatprep.subr.mxu0 0.0
    %115 = vmatpush2.msra.mxu0 0.0
    %116 = vmatprep.subr.mxu0 0.0
    %117 = vmatpush2.msra.mxu0 0.0
    %118 = vmatprep.subr.mxu0 0.0
    %119 = vmatpush2.msra.mxu0 0.0
    %120 = vmatprep.subr.mxu0 0.0
    %121 = vmatpush2.msra.mxu0 0.0
    %122 = vmatprep.subr.mxu0 0.0
    %123 = vmatpush2.msra.mxu0 0.0
    %124 = vmatprep.subr.mxu0 0.0
    %125 = vmatpush2.msra.mxu0 0.0
    %126 = vmatprep.subr.mxu0 0.0
    %127 = vmatpush2.msra.mxu0 0.0
    %128 = vmatprep.subr.mxu0 0.0
    %129 = vmatpush2.msra.mxu0 0.0
    %130 = vmatprep.subr.mxu0 0.0
    %131 = vmatpush2.msra.mxu0 0.0
    %132 = vmatprep.subr.mxu0 0.0
    %133 = vmatpush2.msra.mxu0 0.0
    %134 = vmatprep.subr.mxu0 0.0
    %135 = vmatpush2.msra.mxu0 0.0
    %136 = vmatprep.subr.mxu0 0.0
    %137 = vmatpush2.msra.mxu0 0.0
    %138 = vmatprep.subr.mxu0 0.0
    %139 = vmatpush2.msra.mxu0 0.0
    %140 = vmatprep.mubr.f32.mxu0 0.0
    %141 = vmatmul.mubr.f32.gmra.mxu0 %v65
    %v142 = vpop.f32.mrf.mxu0
    %v143 = vadd.f32 %v46, %v142
    %v144 = vpop.f32.mrf.mxu0
    %145 = vmatprep.mubr.f32.mxu0 0.0
    %146 = vmatmul.mubr.f32.gmra.mxu0 %v68
    %v147 = vpop.f32.mrf.mxu0
    %v148 = vadd.f32 %v51, %v147
    %v149 = vpop.f32.mrf.mxu0
    %150 = vmatprep.mubr.f32.mxu0 0.0
    %151 = vmatmul.mubr.f32.gmra.mxu0 %v71
    %v152 = vpop.f32.mrf.mxu0
    %v153 = vadd.f32 %v56, %v152
    %v154 = vpop.f32.mrf.mxu0
    %155 = vmatprep.mubr.f32.mxu0 0.0
    %156 = vmatmul.mubr.f32.gmra.mxu0 %v74
    %v157 = vpop.f32.mrf.mxu0
    %v158 = vadd.f32 %v61, %v157
    %v159 = vpop.f32.mrf.mxu0
    %160 = vdwg.mxu0
    %v161 = vld [vmem:[%s4] sm:$0xff]
    %v162 = vld [vmem:[%s4 + $0x8] sm:$0xff]
    %v163 = vld [vmem:[%s4 + $0x10] sm:$0xff]
    %v164 = vld [vmem:[%s4 + $0x18] sm:$0xff]
    %v165 = vld [vmem:[%s1] sm:$0xff]
    %v166 = vld [vmem:[%s1 + $0x8] sm:$0xff]
    %v167 = vld [vmem:[%s5] sm:$0xff]
    %v168 = vld [vmem:[%s5 + $0x8] sm:$0xff]
    %v169 = vld [vmem:[%s5 + $0x10] sm:$0xff]
    %v170 = vld [vmem:[%s5 + $0x18] sm:$0xff]
    %172 = vset.pattern.permute.xlu0 0
    %173 = vperm.xlu0 %172, %v167
    %v174 = vpop.permute.xlu0 %173
    %177 = vset.pattern.permute.xlu0 0
    %178 = vperm.xlu0 %177, %v168
    %v179 = vpop.permute.xlu0 %178
    %182 = vset.pattern.permute.xlu0 0
    %183 = vperm.xlu0 %182, %v169
    %v184 = vpop.permute.xlu0 %183
    %187 = vset.pattern.permute.xlu0 0
    %188 = vperm.xlu0 %187, %v170
    %v189 = vpop.permute.xlu0 %188
    %v192 = vsel %vm63, %v161, 0
    %v195 = vsel %vm63, %v162, 0
    %v198 = vsel %vm63, %v163, 0
    %v201 = vsel %vm63, %v164, 0
    %203 = vmatprep.subr.mxu0 0.0
    %204 = vmatpush1.msra.mxu0 0.0
    %205 = vmatprep.subr.mxu0 0.0
    %206 = vmatpush1.msra.mxu0 0.0
    %207 = vmatprep.subr.mxu0 0.0
    %208 = vmatpush1.msra.mxu0 0.0
    %209 = vmatprep.subr.mxu0 0.0
    %210 = vmatpush1.msra.mxu0 0.0
    %211 = vmatprep.subr.mxu0 0.0
    %212 = vmatpush1.msra.mxu0 0.0
    %213 = vmatprep.subr.mxu0 0.0
    %214 = vmatpush1.msra.mxu0 0.0
    %215 = vmatprep.subr.mxu0 0.0
    %216 = vmatpush1.msra.mxu0 0.0
    %217 = vmatprep.subr.mxu0 0.0
    %218 = vmatpush1.msra.mxu0 0.0
    %219 = vmatprep.subr.mxu0 0.0
    %220 = vmatpush1.msra.mxu0 0.0
    %221 = vmatprep.subr.mxu0 0.0
    %222 = vmatpush1.msra.mxu0 0.0
    %223 = vmatprep.subr.mxu0 0.0
    %224 = vmatpush1.msra.mxu0 0.0
    %225 = vmatprep.subr.mxu0 0.0
    %226 = vmatpush1.msra.mxu0 0.0
    %227 = vmatprep.subr.mxu0 0.0
    %228 = vmatpush1.msra.mxu0 0.0
    %229 = vmatprep.subr.mxu0 0.0
    %230 = vmatpush1.msra.mxu0 0.0
    %231 = vmatprep.subr.mxu0 0.0
    %232 = vmatpush1.msra.mxu0 %v166
    %233 = vmatprep.subr.mxu0 0.0
    %234 = vmatpush1.msra.mxu0 %v165
    %235 = vmatprep.subr.mxu0 0.0
    %236 = vmatpush2.msra.mxu0 0.0
    %237 = vmatprep.subr.mxu0 0.0
    %238 = vmatpush2.msra.mxu0 0.0
    %239 = vmatprep.subr.mxu0 0.0
    %240 = vmatpush2.msra.mxu0 0.0
    %241 = vmatprep.subr.mxu0 0.0
    %242 = vmatpush2.msra.mxu0 0.0
    %243 = vmatprep.subr.mxu0 0.0
    %244 = vmatpush2.msra.mxu0 0.0
    %245 = vmatprep.subr.mxu0 0.0
    %246 = vmatpush2.msra.mxu0 0.0
    %247 = vmatprep.subr.mxu0 0.0
    %248 = vmatpush2.msra.mxu0 0.0
    %249 = vmatprep.subr.mxu0 0.0
    %250 = vmatpush2.msra.mxu0 0.0
    %251 = vmatprep.subr.mxu0 0.0
    %252 = vmatpush2.msra.mxu0 0.0
    %253 = vmatprep.subr.mxu0 0.0
    %254 = vmatpush2.msra.mxu0 0.0
    %255 = vmatprep.subr.mxu0 0.0
    %256 = vmatpush2.msra.mxu0 0.0
    %257 = vmatprep.subr.mxu0 0.0
    %258 = vmatpush2.msra.mxu0 0.0
    %259 = vmatprep.subr.mxu0 0.0
    %260 = vmatpush2.msra.mxu0 0.0
    %261 = vmatprep.subr.mxu0 0.0
    %262 = vmatpush2.msra.mxu0 0.0
    %263 = vmatprep.subr.mxu0 0.0
    %264 = vmatpush2.msra.mxu0 0.0
    %265 = vmatprep.subr.mxu0 0.0
    %266 = vmatpush2.msra.mxu0 0.0
    %267 = vmatprep.mubr.f32.mxu0 0.0
    %268 = vmatmul.mubr.f32.gmra.mxu0 %v192
    %v269 = vpop.f32.mrf.mxu0
    %v270 = vadd.f32 %v174, %v269
    %v271 = vpop.f32.mrf.mxu0
    %272 = vmatprep.mubr.f32.mxu0 0.0
    %273 = vmatmul.mubr.f32.gmra.mxu0 %v195
    %v274 = vpop.f32.mrf.mxu0
    %v275 = vadd.f32 %v179, %v274
    %v276 = vpop.f32.mrf.mxu0
    %277 = vmatprep.mubr.f32.mxu0 0.0
    %278 = vmatmul.mubr.f32.gmra.mxu0 %v198
    %v279 = vpop.f32.mrf.mxu0
    %v280 = vadd.f32 %v184, %v279
    %v281 = vpop.f32.mrf.mxu0
    %282 = vmatprep.mubr.f32.mxu0 0.0
    %283 = vmatmul.mubr.f32.gmra.mxu0 %v201
    %v284 = vpop.f32.mrf.mxu0
    %v285 = vadd.f32 %v189, %v284
    %v286 = vpop.f32.mrf.mxu0
    %287 = vdwg.mxu0
    %v288 = vtanh.pop %v143
    %v289 = vtanh.pop %v148
    %v290 = vtanh.pop %v153
    %v291 = vtanh.pop %v158
    %v292 = vtanh.pop %v270
    %v293 = vtanh.pop %v275
    %v294 = vtanh.pop %v280
    %v295 = vtanh.pop %v285
    %v296 = vadd.f32 %v288, %v292
    %v297 = vadd.f32 %v289, %v293
    %v298 = vadd.f32 %v290, %v294
    %v299 = vadd.f32 %v291, %v295
    %v300 = vld [vmem:[%s6] sm:$0xff]
    %v301 = vld [vmem:[%s6 + $0x8] sm:$0xff]
    %v302 = vld [vmem:[%s6 + $0x10] sm:$0xff]
    %v303 = vld [vmem:[%s6 + $0x18] sm:$0xff]
    %v304 = vld [vmem:[%s6 + $0x20] sm:$0xff]
    %v305 = vld [vmem:[%s6 + $0x28] sm:$0xff]
    %v306 = vld [vmem:[%s6 + $0x30] sm:$0xff]
    %v307 = vld [vmem:[%s6 + $0x38] sm:$0xff]
    %v308 = vld [vmem:[%s7] sm:$0xff]
    %v309 = vld [vmem:[%s7 + $0x8] sm:$0xff]
    %v310 = vld [vmem:[%s7 + $0x10] sm:$0xff]
    %v311 = vld [vmem:[%s7 + $0x18] sm:$0xff]
    %v312 = vld [vmem:[%s7 + $0x20] sm:$0xff]
    %v313 = vld [vmem:[%s7 + $0x28] sm:$0xff]
    %v314 = vld [vmem:[%s7 + $0x30] sm:$0xff]
    %v315 = vld [vmem:[%s7 + $0x38] sm:$0xff]
    %317 = vset.pattern.permute.xlu0 0
    %318 = vperm.xlu0 %317, %v308
    %v319 = vpop.permute.xlu0 %318
    %322 = vset.pattern.permute.xlu0 0
    %323 = vperm.xlu0 %322, %v309
    %v324 = vpop.permute.xlu0 %323
    %327 = vset.pattern.permute.xlu0 0
    %328 = vperm.xlu0 %327, %v310
    %v329 = vpop.permute.xlu0 %328
    %332 = vset.pattern.permute.xlu0 0
    %333 = vperm.xlu0 %332, %v311
    %v334 = vpop.permute.xlu0 %333
    %337 = vset.pattern.permute.xlu0 0
    %338 = vperm.xlu0 %337, %v312
    %v339 = vpop.permute.xlu0 %338
    %342 = vset.pattern.permute.xlu0 0
    %343 = vperm.xlu0 %342, %v313
    %v344 = vpop.permute.xlu0 %343
    %347 = vset.pattern.permute.xlu0 0
    %348 = vperm.xlu0 %347, %v314
    %v349 = vpop.permute.xlu0 %348
    %352 = vset.pattern.permute.xlu0 0
    %353 = vperm.xlu0 %352, %v315
    %v354 = vpop.permute.xlu0 %353
    %vm356 = vcmask 261120
    %v358 = vsel %vm356, %v300, 0
    %v361 = vsel %vm356, %v301, 0
    %v364 = vsel %vm356, %v302, 0
    %v367 = vsel %vm356, %v303, 0
    %v370 = vsel %vm356, %v304, 0
    %v373 = vsel %vm356, %v305, 0
    %v376 = vsel %vm356, %v306, 0
    %v379 = vsel %vm356, %v307, 0
    %381 = vmatprep.subr.mxu0 0.0
    %382 = vmatpush1.msra.mxu0 0.0
    %383 = vmatprep.subr.mxu0 0.0
    %384 = vmatpush1.msra.mxu0 0.0
    %385 = vmatprep.subr.mxu0 0.0
    %386 = vmatpush1.msra.mxu0 0.0
    %387 = vmatprep.subr.mxu0 0.0
    %388 = vmatpush1.msra.mxu0 0.0
    %389 = vmatprep.subr.mxu0 0.0
    %390 = vmatpush1.msra.mxu0 0.0
    %391 = vmatprep.subr.mxu0 0.0
    %392 = vmatpush1.msra.mxu0 0.0
    %393 = vmatprep.subr.mxu0 0.0
    %394 = vmatpush1.msra.mxu0 0.0
    %395 = vmatprep.subr.mxu0 0.0
    %396 = vmatpush1.msra.mxu0 0.0
    %397 = vmatprep.subr.mxu0 0.0
    %398 = vmatpush1.msra.mxu0 0.0
    %399 = vmatprep.subr.mxu0 0.0
    %400 = vmatpush1.msra.mxu0 0.0
    %401 = vmatprep.subr.mxu0 0.0
    %402 = vmatpush1.msra.mxu0 0.0
    %403 = vmatprep.subr.mxu0 0.0
    %404 = vmatpush1.msra.mxu0 0.0
    %405 = vmatprep.subr.mxu0 0.0
    %406 = vmatpush1.msra.mxu0 %v299
    %407 = vmatprep.subr.mxu0 0.0
    %408 = vmatpush1.msra.mxu0 %v298
    %409 = vmatprep.subr.mxu0 0.0
    %410 = vmatpush1.msra.mxu0 %v297
    %411 = vmatprep.subr.mxu0 0.0
    %412 = vmatpush1.msra.mxu0 %v296
    %413 = vmatprep.subr.mxu0 0.0
    %414 = vmatpush2.msra.mxu0 0.0
    %415 = vmatprep.subr.mxu0 0.0
    %416 = vmatpush2.msra.mxu0 0.0
    %417 = vmatprep.subr.mxu0 0.0
    %418 = vmatpush2.msra.mxu0 0.0
    %419 = vmatprep.subr.mxu0 0.0
    %420 = vmatpush2.msra.mxu0 0.0
    %421 = vmatprep.subr.mxu0 0.0
    %422 = vmatpush2.msra.mxu0 0.0
    %423 = vmatprep.subr.mxu0 0.0
    %424 = vmatpush2.msra.mxu0 0.0
    %425 = vmatprep.subr.mxu0 0.0
    %426 = vmatpush2.msra.mxu0 0.0
    %427 = vmatprep.subr.mxu0 0.0
    %428 = vmatpush2.msra.mxu0 0.0
    %429 = vmatprep.subr.mxu0 0.0
    %430 = vmatpush2.msra.mxu0 0.0
    %431 = vmatprep.subr.mxu0 0.0
    %432 = vmatpush2.msra.mxu0 0.0
    %433 = vmatprep.subr.mxu0 0.0
    %434 = vmatpush2.msra.mxu0 0.0
    %435 = vmatprep.subr.mxu0 0.0
    %436 = vmatpush2.msra.mxu0 0.0
    %437 = vmatprep.subr.mxu0 0.0
    %438 = vmatpush2.msra.mxu0 0.0
    %439 = vmatprep.subr.mxu0 0.0
    %440 = vmatpush2.msra.mxu0 0.0
    %441 = vmatprep.subr.mxu0 0.0
    %442 = vmatpush2.msra.mxu0 0.0
    %443 = vmatprep.subr.mxu0 0.0
    %444 = vmatpush2.msra.mxu0 0.0
    %445 = vmatprep.mubr.f32.mxu0 0.0
    %446 = vmatmul.mubr.f32.gmra.mxu0 %v358
    %v447 = vpop.f32.mrf.mxu0
    %v448 = vadd.f32 %v319, %v447
    %v449 = vpop.f32.mrf.mxu0
    %450 = vmatprep.mubr.f32.mxu0 0.0
    %451 = vmatmul.mubr.f32.gmra.mxu0 %v361
    %v452 = vpop.f32.mrf.mxu0
    %v453 = vadd.f32 %v324, %v452
    %v454 = vpop.f32.mrf.mxu0
    %455 = vmatprep.mubr.f32.mxu0 0.0
    %456 = vmatmul.mubr.f32.gmra.mxu0 %v364
    %v457 = vpop.f32.mrf.mxu0
    %v458 = vadd.f32 %v329, %v457
    %v459 = vpop.f32.mrf.mxu0
    %460 = vmatprep.mubr.f32.mxu0 0.0
    %461 = vmatmul.mubr.f32.gmra.mxu0 %v367
    %v462 = vpop.f32.mrf.mxu0
    %v463 = vadd.f32 %v334, %v462
    %v464 = vpop.f32.mrf.mxu0
    %465 = vmatprep.mubr.f32.mxu0 0.0
    %466 = vmatmul.mubr.f32.gmra.mxu0 %v370
    %v467 = vpop.f32.mrf.mxu0
    %v468 = vadd.f32 %v339, %v467
    %v469 = vpop.f32.mrf.mxu0
    %470 = vmatprep.mubr.f32.mxu0 0.0
    %471 = vmatmul.mubr.f32.gmra.mxu0 %v373
    %v472 = vpop.f32.mrf.mxu0
    %v473 = vadd.f32 %v344, %v472
    %v474 = vpop.f32.mrf.mxu0
    %475 = vmatprep.mubr.f32.mxu0 0.0
    %476 = vmatmul.mubr.f32.gmra.mxu0 %v376
    %v477 = vpop.f32.mrf.mxu0
    %v478 = vadd.f32 %v349, %v477
    %v479 = vpop.f32.mrf.mxu0
    %480 = vmatprep.mubr.f32.mxu0 0.0
    %481 = vmatmul.mubr.f32.gmra.mxu0 %v379
    %v482 = vpop.f32.mrf.mxu0
    %v483 = vadd.f32 %v354, %v482
    %v484 = vpop.f32.mrf.mxu0
    %485 = vdwg.mxu0
    %v486 = vmax.f32 %v448, 0.0
    %v487 = vmax.f32 %v453, 0.0
    %v488 = vmax.f32 %v458, 0.0
    %v489 = vmax.f32 %v463, 0.0
    %v490 = vmax.f32 %v468, 0.0
    %v491 = vmax.f32 %v473, 0.0
    %v492 = vmax.f32 %v478, 0.0
    %v493 = vmax.f32 %v483, 0.0
    %v494 = vld [vmem:[%s8] sm:$0xff]
    %v495 = vld [vmem:[%s8 + $0x8] sm:$0xff]
    %v496 = vld [vmem:[%s8 + $0x10] sm:$0xff]
    %v497 = vld [vmem:[%s8 + $0x18] sm:$0xff]
    %v498 = vld [vmem:[%s8 + $0x20] sm:$0xff]
    %v499 = vld [vmem:[%s8 + $0x28] sm:$0xff]
    %v500 = vld [vmem:[%s8 + $0x30] sm:$0xff]
    %v501 = vld [vmem:[%s8 + $0x38] sm:$0xff]
    %503 = vset.pattern.permute.xlu0 0
    %504 = vperm.xlu0 %503, %v494
    %v505 = vpop.permute.xlu0 %504
    %508 = vset.pattern.permute.xlu0 0
    %509 = vperm.xlu0 %508, %v495
    %v510 = vpop.permute.xlu0 %509
    %513 = vset.pattern.permute.xlu0 0
    %514 = vperm.xlu0 %513, %v496
    %v515 = vpop.permute.xlu0 %514
    %518 = vset.pattern.permute.xlu0 0
    %519 = vperm.xlu0 %518, %v497
    %v520 = vpop.permute.xlu0 %519
    %523 = vset.pattern.permute.xlu0 0
    %524 = vperm.xlu0 %523, %v498
    %v525 = vpop.permute.xlu0 %524
    %528 = vset.pattern.permute.xlu0 0
    %529 = vperm.xlu0 %528, %v499
    %v530 = vpop.permute.xlu0 %529
    %533 = vset.pattern.permute.xlu0 0
    %534 = vperm.xlu0 %533, %v500
    %v535 = vpop.permute.xlu0 %534
    %538 = vset.pattern.permute.xlu0 0
    %539 = vperm.xlu0 %538, %v501
    %v540 = vpop.permute.xlu0 %539
    %v542 = vmul.f32 %v486, %v505
    %v543 = vmul.f32 %v487, %v510
    %v544 = vmul.f32 %v488, %v515
    %v545 = vmul.f32 %v489, %v520
    %v546 = vmul.f32 %v490, %v525
    %v547 = vmul.f32 %v491, %v530
    %v548 = vmul.f32 %v492, %v535
    %v549 = vmul.f32 %v493, %v540
    %v550 = vadd.f32 %v542, %v543
    %v551 = vadd.f32 %v550, %v544
    %v552 = vadd.f32 %v551, %v545
    %v553 = vadd.f32 %v552, %v546
    %v554 = vadd.f32 %v553, %v547
    %v555 = vadd.f32 %v554, %v548
    %v556 = vadd.f32 %v555, %v549
    %v557 = vrot.slane %v556, 4
    %v558 = vadd.f32 %v556, %v557
    %v559 = vrot.slane %v558, 2
    %v560 = vadd.f32 %v558, %v559
    %v561 = vrot.slane %v560, 1
    %v562 = vadd.f32 %v560, %v561
    %563 = vst [vmem:[#allocation2] sm:$0x1] %v562
    // Predicated region
    $region38: #{tpu_custom_call.1} parent=1 // pred_check
      _
    $region39: #{tpu_custom_call.1} parent=1 // pred_check_branch
      %565 = sbr.rel (0) target = $region41
    $region40: #{tpu_custom_call.1} parent=1 // pred_region
      %s567 = ssub.s32 16, 16
      %568 = vsyncadd [#allocation3], %s567
      %s570 = sshll.u32 [#allocation2], 4
      %s571 = int_to_ptr.vmem [resolvable:$true] %s570
      %573 = dma.vmem_to_hbm [thread:$0]  %s571, 16, %s9, [#allocation3]
    $region41: #{tpu_custom_call.1} parent=1 // pred_fallthru
      _
    // Predicated region
    $region42: #{tpu_custom_call.1} parent=1 // pred_check
      _
    $region43: #{tpu_custom_call.1} parent=1 // pred_check_branch
      %575 = sbr.rel (0) target = $region45
    $region44: #{tpu_custom_call.1} parent=1 // pred_region
      %576 = dma.done [#allocation3], 16
    $region45: #{tpu_custom_call.1} parent=1 // pred_fallthru
      _
    %577 = vsyncpa [#allocation3], 1

</llo_original>
